<compile_context>
chip_gen: v7x
topology: tpu7x:2x2x1
jax: 0.10.0
libtpu: 0.0.40
codegen_flags: <defaults>
</compile_context>

<pallas_src>
import math
import functools

import jax
import jax.numpy as jnp
import numpy as np
from jax import lax
from jax.experimental import pallas as pl
from jax.experimental.pallas import tpu as pltpu


# 48 MiB: leaves double-buffer headroom on v7x (64 MiB physical per TC) and is well within
# v5e/v6e physical VMEM; explicitly above the 16/32 MiB default scoped limits.
_VMEM_LIMIT_BYTES = 48 * 1024 * 1024


def _single_buffered(block_shape, index_map):
    """Constant-index operands (weights / biases) never change across the grid, so request
    single buffering (halves their VMEM footprint at zero perf cost). Falls back to the
    default double-buffered spec if this jax version does not expose pipeline_mode."""
    try:
        return pl.BlockSpec(block_shape, index_map, pipeline_mode=pl.Buffered(1))
    except (AttributeError, TypeError):
        return pl.BlockSpec(block_shape, index_map)


# ---------------------------------------------------------------------------
# Stage 1: Q/K/V input projections -> lane-dense (B, S, D) bf16 activations
# ---------------------------------------------------------------------------
def _qkv_proj_kernel(q_ref, k_ref, v_ref,
                     wq_ref, bq_ref, wk_ref, bk_ref, wv_ref, bv_ref,
                     qo_ref, ko_ref, vo_ref):
    """Per (batch, seq-tile): one wide (Ts, D) @ (D, D) matmul per projection,
    stored lane-dense as (Ts, D) (heads are sliced later, VMEM-local, in Stage 2)."""

    def project(x_ref, w_ref, b_ref, out_ref):
        y = jnp.dot(x_ref[0], w_ref[...],
                    preferred_element_type=jnp.float32) + b_ref[...]   # (Ts, D) f32
        out_ref[0] = y.astype(out_ref.dtype)                           # single lane-dense store

    project(q_ref, wq_ref, bq_ref, qo_ref)
    project(k_ref, wk_ref, bk_ref, ko_ref)
    project(v_ref, wv_ref, bv_ref, vo_ref)


# ---------------------------------------------------------------------------
# Stage 2: flash attention (online softmax) + fused output projection
# ---------------------------------------------------------------------------
def _flash_attn_kernel(qh_ref, kh_ref, vh_ref, wo_ref, bo_ref, o_ref,
                       m_sc, l_sc, acc_sc, *, num_heads: int, d_k: int):
    ki = pl.program_id(2)

    @pl.when(ki == 0)
    def _init():
        m_sc[...] = jnp.full(m_sc.shape, -jnp.inf, jnp.float32)
        l_sc[...] = jnp.zeros(l_sc.shape, jnp.float32)
        acc_sc[...] = jnp.zeros(acc_sc.shape, jnp.float32)

    q = qh_ref[0]          # (Tq, D) bf16, scores pre-scaled via W_q/b_q folding
    k = kh_ref[0]          # (Tk, D) bf16
    v = vh_ref[0]          # (Tk, D) bf16

    # Per-head online softmax. Looping over heads bounds the live (Tq, Tk) score / prob
    # intermediates to a single head at a time (lower VMEM pressure / spill traffic).
    for h in range(num_heads):
        sl = slice(h * d_k, (h + 1) * d_k)
        # QK^T: contract the d_k lane slice of both operands directly (no transpose).
        s = lax.dot_general(q[:, sl], k[:, sl],
                            (((1,), (1,)), ((), ())),
                            preferred_element_type=jnp.float32)        # (Tq, Tk) f32
        # TODO(synk): optional attention mask (mask == 0 -> -1e9) would be applied to `s` here.

        m_prev = m_sc[h]                                               # (Tq, 1) f32
        m_new = jnp.maximum(m_prev, jnp.max(s, axis=-1, keepdims=True))
        alpha = jnp.exp(m_prev - m_new)                                # (Tq, 1) f32
        # bf16 exp: p is consumed in bf16 by the PV matmul anyway; the EUP is the
        # saturating slot for small d_k on v6e/v7x. l row-sum and acc stay f32.
        p = jnp.exp((s - m_new).astype(jnp.bfloat16))                  # (Tq, Tk) bf16
        l_sc[h] = alpha * l_sc[h] + jnp.sum(p.astype(jnp.float32),
                                            axis=-1, keepdims=True)
        pv = jnp.dot(p, v[:, sl], preferred_element_type=jnp.float32)  # (Tq, d_k) f32
        acc_sc[:, sl] = alpha * acc_sc[:, sl] + pv
        m_sc[h] = m_new

    @pl.when(ki == pl.num_programs(2) - 1)
    def _finalize():
        # Normalize each head in place (cheap VMEM-local lane-offset stores), then a
        # single full-width (Tq, D) @ (D, D) output projection keeps the MXU filled.
        for h in range(num_heads):
            sl = slice(h * d_k, (h + 1) * d_k)
            acc_sc[:, sl] = acc_sc[:, sl] * pl.reciprocal(l_sc[h], approx=True)
        attn = acc_sc[...].astype(jnp.bfloat16)                        # (Tq, D)
        out = jnp.dot(attn, wo_ref[...],
                      preferred_element_type=jnp.float32) + bo_ref[...]
        o_ref[0] = out.astype(o_ref.dtype)                             # lane-dense (Tq, D) store


def _choose_tile(n: int, preferred: int) -> int:
    """Largest multiple-of-8 tile <= preferred that divides n (else the full extent).
    A non-multiple-of-8 full extent is legal because a block equal to the full array
    dimension is exempt from the (8, 128) divisibility rule."""
    if n <= preferred:
        return n
    t = (preferred // 8) * 8
    while t >= 8:
        if n % t == 0:
            return t
        t -= 8
    return n


def multi_head_attention(Q, K, V, params, *, num_heads: int,
                         s_tile: int = 512, q_tile: int = 256, kv_tile: int = 256):
    """Q, K, V: (B, S, D) float32. params: PyTorch-convention weights. Returns (B, S, D)."""
    B, S, D = Q.shape
    assert D % num_heads == 0
    d_k = D // num_heads
    scale = 1.0 / math.sqrt(d_k)

    # Host-side prep: bf16 activations (halves Stage-1 input HBM traffic; the matmul is bf16
    # anyway), pre-transposed bf16 weights, and the score scale folded into W_q / b_q.
    Qb = Q.astype(jnp.bfloat16)
    Kb = K.astype(jnp.bfloat16)
    Vb = V.astype(jnp.bfloat16)
    wq_t = (params["W_q"].T * scale).astype(jnp.bfloat16)
    wk_t = params["W_k"].T.astype(jnp.bfloat16)
    wv_t = params["W_v"].T.astype(jnp.bfloat16)
    wo_t = params["W_o"].T.astype(jnp.bfloat16)
    bq = (params["b_q"] * scale).reshape(1, D).astype(jnp.float32)
    bk = params["b_k"].reshape(1, D).astype(jnp.float32)
    bv = params["b_v"].reshape(1, D).astype(jnp.float32)
    bo = params["b_o"].reshape(1, D).astype(jnp.float32)

    # ---------------- Stage 1: projections ----------------
    ts = _choose_tile(S, s_tile)
    # TODO(synk): for very large D (>= ~2048 on v7x) add an output-column grid axis to the
    # weight / output BlockSpecs so the three (D, D) weights need not be VMEM-resident.
    seq_spec = pl.BlockSpec((1, ts, D), lambda b, si: (b, si, 0))
    w_spec = _single_buffered((D, D), lambda b, si: (0, 0))
    bias_spec = _single_buffered((1, D), lambda b, si: (0, 0))
    proj_out_spec = pl.BlockSpec((1, ts, D), lambda b, si: (b, si, 0))
    proj_out_shape = jax.ShapeDtypeStruct((B, S, D), jnp.bfloat16)

    qh, kh, vh = pl.pallas_call(
        _qkv_proj_kernel,
        out_shape=(proj_out_shape, proj_out_shape, proj_out_shape),
        grid_spec=pltpu.PrefetchScalarGridSpec(
            num_scalar_prefetch=0,
            grid=(B, S // ts),
            in_specs=[seq_spec, seq_spec, seq_spec,
                      w_spec, bias_spec, w_spec, bias_spec, w_spec, bias_spec],
            out_specs=[proj_out_spec, proj_out_spec, proj_out_spec],
        ),
        compiler_params=pltpu.CompilerParams(
            dimension_semantics=("parallel", "parallel"),
            vmem_limit_bytes=_VMEM_LIMIT_BYTES),
    )(Qb, Kb, Vb, wq_t, bq, wk_t, bk, wv_t, bv)

    # ---------------- Stage 2: flash attention + fused output projection ----------------
    tq = _choose_tile(S, q_tile)
    tk = _choose_tile(S, kv_tile)
    # Megacore occupancy guard (v7x has 2 TensorCores): keep >= 2 programs on the
    # parallel axes when possible (e.g. don't let B == 1 collapse to one full-S q tile).
    if B * (S // tq) < 2:
        half = _choose_tile(S, max(8, tq // 2))
        if half < tq:
            tq = half

    flash_kernel = functools.partial(_flash_attn_kernel, num_heads=num_heads, d_k=d_k)

    q_spec = pl.BlockSpec((1, tq, D), lambda b, qi, ki: (b, qi, 0))
    kv_spec = pl.BlockSpec((1, tk, D), lambda b, qi, ki: (b, ki, 0))
    wo_spec = _single_buffered((D, D), lambda b, qi, ki: (0, 0))
    bo_spec = _single_buffered((1, D), lambda b, qi, ki: (0, 0))
    out_spec = pl.BlockSpec((1, tq, D), lambda b, qi, ki: (b, qi, 0))

    out = pl.pallas_call(
        flash_kernel,
        out_shape=jax.ShapeDtypeStruct((B, S, D), Q.dtype),
        grid_spec=pltpu.PrefetchScalarGridSpec(
            num_scalar_prefetch=0,
            grid=(B, S // tq, S // tk),
            in_specs=[q_spec, kv_spec, kv_spec, wo_spec, bo_spec],
            out_specs=out_spec,
            scratch_shapes=[pltpu.VMEM((num_heads, tq, 1), jnp.float32),   # m
                            pltpu.VMEM((num_heads, tq, 1), jnp.float32),   # l
                            pltpu.VMEM((tq, D), jnp.float32)],             # acc (lane-dense)
        ),
        compiler_params=pltpu.CompilerParams(
            dimension_semantics=("parallel", "parallel", "arbitrary"),
            vmem_limit_bytes=_VMEM_LIMIT_BYTES),
    )(qh, kh, vh, wo_t, bo)
    return out


def _reference(Q, K, V, params, *, num_heads: int):
    """Pure-JAX f32 reference mirroring the PyTorch forward (mask=None)."""
    B, S, D = Q.shape
    d_k = D // num_heads

    def proj(x, w, b):
        return x @ w.T + b

    def split(x):  # (B, S, D) -> (B, H, S, d_k)
        return x.reshape(B, S, num_heads, d_k).transpose(0, 2, 1, 3)

    q = split(proj(Q, params["W_q"], params["b_q"]))
    k = split(proj(K, params["W_k"], params["b_k"]))
    v = split(proj(V, params["W_v"], params["b_v"]))

    scores = jnp.einsum("bhqd,bhkd->bhqk", q, k) / math.sqrt(d_k)
    probs = jax.nn.softmax(scores, axis=-1)
    out = jnp.einsum("bhqk,bhkd->bhqd", probs, v)
    out = out.transpose(0, 2, 1, 3).reshape(B, S, D)
    return proj(out, params["W_o"], params["b_o"])


if __name__ == "__main__":
    B, S, D, H = 2, 8, 32, 4  # batch, seq, d_model, num_heads

    key = jax.random.PRNGKey(0)
    keys = jax.random.split(key, 12)

    bound = 1.0 / math.sqrt(D)  # PyTorch nn.Linear default init range
    params = {
        "W_q": jax.random.uniform(keys[0], (D, D), jnp.float32, -bound, bound),
        "b_q": jax.random.uniform(keys[1], (D,), jnp.float32, -bound, bound),
        "W_k": jax.random.uniform(keys[2], (D, D), jnp.float32, -bound, bound),
        "b_k": jax.random.uniform(keys[3], (D,), jnp.float32, -bound, bound),
        "W_v": jax.random.uniform(keys[4], (D, D), jnp.float32, -bound, bound),
        "b_v": jax.random.uniform(keys[5], (D,), jnp.float32, -bound, bound),
        "W_o": jax.random.uniform(keys[6], (D, D), jnp.float32, -bound, bound),
        "b_o": jax.random.uniform(keys[7], (D,), jnp.float32, -bound, bound),
    }

    Q = jax.random.normal(keys[8], (B, S, D), jnp.float32)
    K = jax.random.normal(keys[9], (B, S, D), jnp.float32)
    V = jax.random.normal(keys[10], (B, S, D), jnp.float32)

    out = multi_head_attention(Q, K, V, params, num_heads=H)
    out = jax.block_until_ready(out)

    ref = jax.block_until_ready(_reference(Q, K, V, params, num_heads=H))
    assert out.shape == (B, S, D)
    # bf16 MXU operands / bf16 exp with f32 accumulation -> compare against the f32
    # reference with a bf16-appropriate tolerance.
    np.testing.assert_allclose(np.asarray(out, dtype=np.float32), np.asarray(ref),
                               rtol=5e-2, atol=5e-2)

    print("KERNEL_OK")
</pallas_src>

<mosaic_0001>
module attributes {stable_mosaic.version = 11 : i64} {
  func.func @_qkv_proj_kernel(%arg0: i32, %arg1: i32, %arg2: memref<1x8x32xbf16, #tpu.memory_space<vmem>>, %arg3: memref<1x8x32xbf16, #tpu.memory_space<vmem>>, %arg4: memref<1x8x32xbf16, #tpu.memory_space<vmem>>, %arg5: memref<32x32xbf16, #tpu.memory_space<vmem>>, %arg6: memref<1x32xf32, #tpu.memory_space<vmem>>, %arg7: memref<32x32xbf16, #tpu.memory_space<vmem>>, %arg8: memref<1x32xf32, #tpu.memory_space<vmem>>, %arg9: memref<32x32xbf16, #tpu.memory_space<vmem>>, %arg10: memref<1x32xf32, #tpu.memory_space<vmem>>, %arg11: memref<1x8x32xbf16, #tpu.memory_space<vmem>>, %arg12: memref<1x8x32xbf16, #tpu.memory_space<vmem>>, %arg13: memref<1x8x32xbf16, #tpu.memory_space<vmem>>) attributes {dimension_semantics = [#tpu.dimension_semantics<parallel>, #tpu.dimension_semantics<parallel>], iteration_bounds = array<i64: 2, 1>, scalar_prefetch = 0 : i64, scratch_operands = 0 : i64, tpu.core_type = #tpu.core_type<tc>, window_params = [{transform_indices = @transform_0, window_bounds = array<i64: 1, 8, 32>}, {transform_indices = @transform_1, window_bounds = array<i64: 1, 8, 32>}, {transform_indices = @transform_2, window_bounds = array<i64: 1, 8, 32>}, {pipeline_mode = #tpu.pipeline_mode<synchronous>, transform_indices = @transform_3, window_bounds = array<i64: 32, 32>}, {pipeline_mode = #tpu.pipeline_mode<synchronous>, transform_indices = @transform_4, window_bounds = array<i64: 1, 32>}, {pipeline_mode = #tpu.pipeline_mode<synchronous>, transform_indices = @transform_5, window_bounds = array<i64: 32, 32>}, {pipeline_mode = #tpu.pipeline_mode<synchronous>, transform_indices = @transform_6, window_bounds = array<i64: 1, 32>}, {pipeline_mode = #tpu.pipeline_mode<synchronous>, transform_indices = @transform_7, window_bounds = array<i64: 32, 32>}, {pipeline_mode = #tpu.pipeline_mode<synchronous>, transform_indices = @transform_8, window_bounds = array<i64: 1, 32>}, {transform_indices = @transform_9, window_bounds = array<i64: 1, 8, 32>}, {transform_indices = @transform_10, window_bounds = array<i64: 1, 8, 32>}, {transform_indices = @transform_11, window_bounds = array<i64: 1, 8, 32>}]} {
    %c0 = arith.constant 0 : index
    %c0_0 = arith.constant 0 : index
    %c0_1 = arith.constant 0 : index
    %0 = vector.load %arg2[%c0, %c0_0, %c0_1] : memref<1x8x32xbf16, #tpu.memory_space<vmem>>, vector<1x8x32xbf16>
    %1 = vector.shape_cast %0 : vector<1x8x32xbf16> to vector<8x32xbf16>
    %c0_2 = arith.constant 0 : index
    %c0_3 = arith.constant 0 : index
    %2 = vector.load %arg5[%c0_2, %c0_3] : memref<32x32xbf16, #tpu.memory_space<vmem>>, vector<32x32xbf16>
    %cst = arith.constant dense<0.000000e+00> : vector<8x32xf32>
    %3 = tpu.matmul %1, %2, %cst {dimension_numbers = #tpu.dot_dimension_numbers<[1], [0], [0], [1], [0, 0, 1, 1], [], []>} : vector<8x32xbf16>, vector<32x32xbf16>, vector<8x32xf32> -> vector<8x32xf32>
    %c0_4 = arith.constant 0 : index
    %c0_5 = arith.constant 0 : index
    %4 = vector.load %arg6[%c0_4, %c0_5] : memref<1x32xf32, #tpu.memory_space<vmem>>, vector<1x32xf32>
    %5 = vector.broadcast %4 : vector<1x32xf32> to vector<8x32xf32>
    %6 = arith.addf %3, %5 : vector<8x32xf32>
    %7 = arith.truncf %6 : vector<8x32xf32> to vector<8x32xbf16>
    %c0_6 = arith.constant 0 : index
    %c0_7 = arith.constant 0 : index
    %c0_8 = arith.constant 0 : index
    %8 = vector.load %arg11[%c0_6, %c0_7, %c0_8] : memref<1x8x32xbf16, #tpu.memory_space<vmem>>, vector<1x8x32xbf16>
    %9 = vector.shape_cast %8 : vector<1x8x32xbf16> to vector<8x32xbf16>
    %10 = vector.shape_cast %7 : vector<8x32xbf16> to vector<1x8x32xbf16>
    tpu.vector_store %arg11[%c0_6, %c0_7, %c0_8], %10 {strides = array<i32>} : memref<1x8x32xbf16, #tpu.memory_space<vmem>>, vector<1x8x32xbf16>,
    %c0_9 = arith.constant 0 : index
    %c0_10 = arith.constant 0 : index
    %c0_11 = arith.constant 0 : index
    %11 = vector.load %arg3[%c0_9, %c0_10, %c0_11] : memref<1x8x32xbf16, #tpu.memory_space<vmem>>, vector<1x8x32xbf16>
    %12 = vector.shape_cast %11 : vector<1x8x32xbf16> to vector<8x32xbf16>
    %c0_12 = arith.constant 0 : index
    %c0_13 = arith.constant 0 : index
    %13 = vector.load %arg7[%c0_12, %c0_13] : memref<32x32xbf16, #tpu.memory_space<vmem>>, vector<32x32xbf16>
    %cst_14 = arith.constant dense<0.000000e+00> : vector<8x32xf32>
    %14 = tpu.matmul %12, %13, %cst_14 {dimension_numbers = #tpu.dot_dimension_numbers<[1], [0], [0], [1], [0, 0, 1, 1], [], []>} : vector<8x32xbf16>, vector<32x32xbf16>, vector<8x32xf32> -> vector<8x32xf32>
    %c0_15 = arith.constant 0 : index
    %c0_16 = arith.constant 0 : index
    %15 = vector.load %arg8[%c0_15, %c0_16] : memref<1x32xf32, #tpu.memory_space<vmem>>, vector<1x32xf32>
    %16 = vector.broadcast %15 : vector<1x32xf32> to vector<8x32xf32>
    %17 = arith.addf %14, %16 : vector<8x32xf32>
    %18 = arith.truncf %17 : vector<8x32xf32> to vector<8x32xbf16>
    %c0_17 = arith.constant 0 : index
    %c0_18 = arith.constant 0 : index
    %c0_19 = arith.constant 0 : index
    %19 = vector.load %arg12[%c0_17, %c0_18, %c0_19] : memref<1x8x32xbf16, #tpu.memory_space<vmem>>, vector<1x8x32xbf16>
    %20 = vector.shape_cast %19 : vector<1x8x32xbf16> to vector<8x32xbf16>
    %21 = vector.shape_cast %18 : vector<8x32xbf16> to vector<1x8x32xbf16>
    tpu.vector_store %arg12[%c0_17, %c0_18, %c0_19], %21 {strides = array<i32>} : memref<1x8x32xbf16, #tpu.memory_space<vmem>>, vector<1x8x32xbf16>,
    %c0_20 = arith.constant 0 : index
    %c0_21 = arith.constant 0 : index
    %c0_22 = arith.constant 0 : index
    %22 = vector.load %arg4[%c0_20, %c0_21, %c0_22] : memref<1x8x32xbf16, #tpu.memory_space<vmem>>, vector<1x8x32xbf16>
    %23 = vector.shape_cast %22 : vector<1x8x32xbf16> to vector<8x32xbf16>
    %c0_23 = arith.constant 0 : index
    %c0_24 = arith.constant 0 : index
    %24 = vector.load %arg9[%c0_23, %c0_24] : memref<32x32xbf16, #tpu.memory_space<vmem>>, vector<32x32xbf16>
    %cst_25 = arith.constant dense<0.000000e+00> : vector<8x32xf32>
    %25 = tpu.matmul %23, %24, %cst_25 {dimension_numbers = #tpu.dot_dimension_numbers<[1], [0], [0], [1], [0, 0, 1, 1], [], []>} : vector<8x32xbf16>, vector<32x32xbf16>, vector<8x32xf32> -> vector<8x32xf32>
    %c0_26 = arith.constant 0 : index
    %c0_27 = arith.constant 0 : index
    %26 = vector.load %arg10[%c0_26, %c0_27] : memref<1x32xf32, #tpu.memory_space<vmem>>, vector<1x32xf32>
    %27 = vector.broadcast %26 : vector<1x32xf32> to vector<8x32xf32>
    %28 = arith.addf %25, %27 : vector<8x32xf32>
    %29 = arith.truncf %28 : vector<8x32xf32> to vector<8x32xbf16>
    %c0_28 = arith.constant 0 : index
    %c0_29 = arith.constant 0 : index
    %c0_30 = arith.constant 0 : index
    %30 = vector.load %arg13[%c0_28, %c0_29, %c0_30] : memref<1x8x32xbf16, #tpu.memory_space<vmem>>, vector<1x8x32xbf16>
    %31 = vector.shape_cast %30 : vector<1x8x32xbf16> to vector<8x32xbf16>
    %32 = vector.shape_cast %29 : vector<8x32xbf16> to vector<1x8x32xbf16>
    tpu.vector_store %arg13[%c0_28, %c0_29, %c0_30], %32 {strides = array<i32>} : memref<1x8x32xbf16, #tpu.memory_space<vmem>>, vector<1x8x32xbf16>,
    return
  }
  func.func @transform_0(%arg0: i32, %arg1: i32) -> (i32, i32, i32) {
    %c0_i32 = arith.constant 0 : i32
    %c0_i32_0 = arith.constant 0 : i32
    return %arg0, %arg1, %c0_i32 : i32, i32, i32
  }
  func.func @transform_1(%arg0: i32, %arg1: i32) -> (i32, i32, i32) {
    %c0_i32 = arith.constant 0 : i32
    %c0_i32_0 = arith.constant 0 : i32
    return %arg0, %arg1, %c0_i32 : i32, i32, i32
  }
  func.func @transform_2(%arg0: i32, %arg1: i32) -> (i32, i32, i32) {
    %c0_i32 = arith.constant 0 : i32
    %c0_i32_0 = arith.constant 0 : i32
    return %arg0, %arg1, %c0_i32 : i32, i32, i32
  }
  func.func @transform_3(%arg0: i32, %arg1: i32) -> (i32, i32) {
    %c0_i32 = arith.constant 0 : i32
    %c0_i32_0 = arith.constant 0 : i32
    %c0_i32_1 = arith.constant 0 : i32
    return %c0_i32, %c0_i32_0 : i32, i32
  }
  func.func @transform_4(%arg0: i32, %arg1: i32) -> (i32, i32) {
    %c0_i32 = arith.constant 0 : i32
    %c0_i32_0 = arith.constant 0 : i32
    %c0_i32_1 = arith.constant 0 : i32
    return %c0_i32, %c0_i32_0 : i32, i32
  }
  func.func @transform_5(%arg0: i32, %arg1: i32) -> (i32, i32) {
    %c0_i32 = arith.constant 0 : i32
    %c0_i32_0 = arith.constant 0 : i32
    %c0_i32_1 = arith.constant 0 : i32
    return %c0_i32, %c0_i32_0 : i32, i32
  }
  func.func @transform_6(%arg0: i32, %arg1: i32) -> (i32, i32) {
    %c0_i32 = arith.constant 0 : i32
    %c0_i32_0 = arith.constant 0 : i32
    %c0_i32_1 = arith.constant 0 : i32
    return %c0_i32, %c0_i32_0 : i32, i32
  }
  func.func @transform_7(%arg0: i32, %arg1: i32) -> (i32, i32) {
    %c0_i32 = arith.constant 0 : i32
    %c0_i32_0 = arith.constant 0 : i32
    %c0_i32_1 = arith.constant 0 : i32
    return %c0_i32, %c0_i32_0 : i32, i32
  }
  func.func @transform_8(%arg0: i32, %arg1: i32) -> (i32, i32) {
    %c0_i32 = arith.constant 0 : i32
    %c0_i32_0 = arith.constant 0 : i32
    %c0_i32_1 = arith.constant 0 : i32
    return %c0_i32, %c0_i32_0 : i32, i32
  }
  func.func @transform_9(%arg0: i32, %arg1: i32) -> (i32, i32, i32) {
    %c0_i32 = arith.constant 0 : i32
    %c0_i32_0 = arith.constant 0 : i32
    return %arg0, %arg1, %c0_i32 : i32, i32, i32
  }
  func.func @transform_10(%arg0: i32, %arg1: i32) -> (i32, i32, i32) {
    %c0_i32 = arith.constant 0 : i32
    %c0_i32_0 = arith.constant 0 : i32
    return %arg0, %arg1, %c0_i32 : i32, i32, i32
  }
  func.func @transform_11(%arg0: i32, %arg1: i32) -> (i32, i32, i32) {
    %c0_i32 = arith.constant 0 : i32
    %c0_i32_0 = arith.constant 0 : i32
    return %arg0, %arg1, %c0_i32 : i32, i32, i32
  }
}

</mosaic_0001>

<llo_original>
// kernel: tpu_custom_call.1
$region0: #{tpu_custom_call.1}
  #allocation0 [shape = 'u32[]', space=smem, size = 0x4, offset = 0x4, fixed_abs, tag = 'smem constant byte address 0x4 - core index']
  #allocation1 [shape = 'u32[144,128]{1,0:T(1,128)}', space=vmem, size = 0x12000, scoped, tag = 'internal scratch']
  %s0 = inlined_call_operand.hbm [shape: bf16[2,8,32], index: 0, kind: input, shape index: {}]
  %s1 = inlined_call_operand.hbm [shape: bf16[2,8,32], index: 1, kind: input, shape index: {}]
  %s2 = inlined_call_operand.hbm [shape: bf16[2,8,32], index: 2, kind: input, shape index: {}]
  %s3 = inlined_call_operand.hbm [shape: bf16[32,32], index: 3, kind: input, shape index: {}]
  %s4 = inlined_call_operand.vmem [shape: f32[1,32], index: 4, kind: input, shape index: {}]
  %s5 = inlined_call_operand.vmem [shape: bf16[32,32], index: 5, kind: input, shape index: {}]
  %s6 = inlined_call_operand.vmem [shape: f32[1,32], index: 6, kind: input, shape index: {}]
  %s7 = inlined_call_operand.hbm [shape: bf16[32,32], index: 7, kind: input, shape index: {}]
  %s8 = inlined_call_operand.vmem [shape: f32[1,32], index: 8, kind: input, shape index: {}]
  %s9 = inlined_call_operand.hbm [shape: bf16[2,8,32], index: 9, kind: output, shape index: {0}]
  %s10 = inlined_call_operand.hbm [shape: bf16[2,8,32], index: 10, kind: output, shape index: {1}]
  %s11 = inlined_call_operand.hbm [shape: bf16[2,8,32], index: 11, kind: output, shape index: {2}]
  %12 = xla_tuple %s9, %s10, %s11
  %s13 = sld [smem:[#allocation0]]
  $region105: #{tpu_custom_call.1} parent=0
    _
  %s15 = ssub.s32 1, %s13
  %s16 = scalar_select 0, %s15, %s13
  $region1: #{tpu_custom_call.1} parent=0
    #allocation2 [shape = 'u8[4096]{0}', space=vmem, size = 0x1000, scoped, tag = 'input window, operand 0']
    #allocation3 [shape = 's32[2]{0}', space=sflag, size = 0x8, scoped, tag = 'scoped memory for tpu_custom_call.1']
    #allocation4 [shape = 's32[2]{0}', space=sflag, size = 0x8, scoped, tag = 'scoped memory for tpu_custom_call.1']
    #allocation5 [shape = 'u8[4096]{0}', space=vmem, size = 0x1000, scoped, tag = 'input window, operand 1']
    #allocation6 [shape = 's32[2]{0}', space=sflag, size = 0x8, scoped, tag = 'scoped memory for tpu_custom_call.1']
    #allocation7 [shape = 'u8[4096]{0}', space=vmem, size = 0x1000, scoped, tag = 'input window, operand 2']
    #allocation8 [shape = 'u8[8192]{0}', space=vmem, size = 0x2000, scoped, tag = 'input window, operand 3, single buffered']
    #allocation9 [shape = 's32[1]{0}', space=sflag, size = 0x4, scoped, tag = 'scoped memory for tpu_custom_call.1']
    #allocation10 [shape = 'u8[8192]{0}', space=vmem, size = 0x2000, scoped, tag = 'input window, operand 7, single buffered']
    #allocation11 [shape = 'u8[4096]{0}', space=vmem, size = 0x1000, scoped, tag = 'output window, operand 0']
    #allocation12 [shape = 'u8[4096]{0}', space=vmem, size = 0x1000, scoped, tag = 'output window, operand 1']
    #allocation13 [shape = 's32[2]{0}', space=sflag, size = 0x8, scoped, tag = 'scoped memory for tpu_custom_call.1']
    #allocation14 [shape = 'u8[4096]{0}', space=vmem, size = 0x1000, scoped, tag = 'output window, operand 2']
    %17 = vsyncpa [#allocation3], 0
    %s18 = scalar_lea.sflag [#allocation3], 1
    %19 = vsyncpa %s18, 0
    %20 = vsyncpa [#allocation6], 0
    %s21 = scalar_lea.sflag [#allocation6], 1
    %22 = vsyncpa %s21, 0
    %23 = vsyncpa [#allocation9], 0
    %24 = vsyncpa [#allocation4], 0
    %s25 = scalar_lea.sflag [#allocation4], 1
    %26 = vsyncpa %s25, 0
    %27 = vsyncpa [#allocation13], 0
    %s28 = scalar_lea.sflag [#allocation13], 1
    %29 = vsyncpa %s28, 0
    loop: start=0, step=1, limit=4
    $region2: #{tpu_custom_call.1} parent=1 // loop_pre_header
      _
    $region3: #{tpu_custom_call.1} parent=1 // loop_header
      %s31 = sphi 0, %s35
      %p32 = scmp.ge.s32.totalorder %s31, 4
      %s38 = sphi 0, %s50
      %s39 = sphi 0, %s46
      %s40 = sphi 0, %s38
      %s41 = sphi 0, %s39
      %s42 = sphi 0, %s40
      %s43 = sphi 0, %s41
      %s55 = sphi 0, %s57
      %s58 = sphi 0, %s55
      %s59 = sphi 0, %s58
      %s75 = sphi 0, %s59
      %s83 = sphi 0, %s85
      %s86 = sphi 0, %s83
      %s87 = sphi 0, %s86
      %s103 = sphi 0, %s87
      %s111 = sphi 0, %s113
      %s114 = sphi 0, %s111
      %s115 = sphi 0, %s114
      %s131 = sphi 0, %s115
      %s135 = sphi 0, %s135
      %s137 = sphi 0, %s135
      %s138 = sphi 0, %s137
      %s152 = sphi 0, %s138
      %s156 = sphi 0, %s156
      %s158 = sphi 0, %s156
      %s159 = sphi 0, %s158
      %s173 = sphi 0, %s159
      %s177 = sphi 0, %s177
      %s179 = sphi 0, %s177
      %s180 = sphi 0, %s179
      %s194 = sphi 0, %s180
      %s198 = sphi 0, %s198
      %s200 = sphi 0, %s198
      %s201 = sphi 0, %s200
      %s215 = sphi 0, %s201
      %s219 = sphi 0, %s219
      %s221 = sphi 0, %s219
      %s222 = sphi 0, %s221
      %s236 = sphi 0, %s222
      %s240 = sphi 0, %s240
      %s242 = sphi 0, %s240
      %s243 = sphi 0, %s242
      %s257 = sphi 0, %s243
      %s265 = sphi 0, %s267
      %s268 = sphi 0, %s265
      %s269 = sphi 0, %s268
      %s285 = sphi 0, %s269
      %s293 = sphi 0, %s295
      %s296 = sphi 0, %s293
      %s297 = sphi 0, %s296
      %s313 = sphi 0, %s297
      %s321 = sphi 0, %s323
      %s324 = sphi 0, %s321
      %s325 = sphi 0, %s324
      %s341 = sphi 0, %s325
    $region4: #{tpu_custom_call.1} parent=1 // loop_header_branch
      %34 = sbr.rel (%p32) target = $region8
    $region5: #{tpu_custom_call.1} parent=1 // loop_body
      %s36 = ssub.s32 %s31, 1
      %s37 = ssub.s32 %s31, 2
      %s44 = sadd.s32 1, %s39
      %p45 = scmp.ge.s32.totalorder %s44, 1
      %s46 = scalar_select %p45, 0, %s44
      %s47 = sadd.s32 1, %s38
      %s48 = scalar_select %p45, %s47, %s38
      %p49 = scmp.ge.s32.totalorder %s48, 2
      %s50 = scalar_select %p49, 0, %s48
      %s51 = ssub.s32 %s38, %s50
      %s52 = ssub.s32 %s39, %s46
      %s53 = sor.u32 %s51, %s52
      %p54 = scmp.eq.s32.totalorder %s53, 0
      %s56 = sadd.s32 %s55, 1
      %s57 = scalar_select %p54, %s55, %s56
      %p60 = pneg %p54
      %p61 = scmp.eq.s32.totalorder %s31, 1
      %p62 = por %p60, %p61
      %p63 = scmp.ne.s32.totalorder %s55, %s58
      %p64 = scmp.eq.s32.totalorder %s31, 0
      %p65 = por %p63, %p64
      %p66 = scmp.ne.s32.totalorder %s55, %s58
      %p67 = scmp.eq.s32.totalorder %s36, 1
      %p68 = por %p66, %p67
      %p69 = scmp.ne.s32.totalorder %s58, %s59
      %p70 = scmp.eq.s32.totalorder %s36, 0
      %p71 = por %p69, %p70
      %p72 = scmp.ne.s32.totalorder %s58, %s59
      %p73 = scmp.eq.s32.totalorder %s37, 1
      %p74 = por %p72, %p73
      %p76 = scmp.ne.s32.totalorder %s59, %s75
      %p77 = scmp.eq.s32.totalorder %s37, 0
      %p78 = por %p76, %p77
      %s79 = ssub.s32 %s38, %s50
      %s80 = ssub.s32 %s39, %s46
      %s81 = sor.u32 %s79, %s80
      %p82 = scmp.eq.s32.totalorder %s81, 0
      %s84 = sadd.s32 %s83, 1
      %s85 = scalar_select %p82, %s83, %s84
      %p88 = pneg %p82
      %p89 = scmp.eq.s32.totalorder %s31, 1
      %p90 = por %p88, %p89
      %p91 = scmp.ne.s32.totalorder %s83, %s86
      %p92 = scmp.eq.s32.totalorder %s31, 0
      %p93 = por %p91, %p92
      %p94 = scmp.ne.s32.totalorder %s83, %s86
      %p95 = scmp.eq.s32.totalorder %s36, 1
      %p96 = por %p94, %p95
      %p97 = scmp.ne.s32.totalorder %s86, %s87
      %p98 = scmp.eq.s32.totalorder %s36, 0
      %p99 = por %p97, %p98
      %p100 = scmp.ne.s32.totalorder %s86, %s87
      %p101 = scmp.eq.s32.totalorder %s37, 1
      %p102 = por %p100, %p101
      %p104 = scmp.ne.s32.totalorder %s87, %s103
      %p105 = scmp.eq.s32.totalorder %s37, 0
      %p106 = por %p104, %p105
      %s107 = ssub.s32 %s38, %s50
      %s108 = ssub.s32 %s39, %s46
      %s109 = sor.u32 %s107, %s108
      %p110 = scmp.eq.s32.totalorder %s109, 0
      %s112 = sadd.s32 %s111, 1
      %s113 = scalar_select %p110, %s111, %s112
      %p116 = pneg %p110
      %p117 = scmp.eq.s32.totalorder %s31, 1
      %p118 = por %p116, %p117
      %p119 = scmp.ne.s32.totalorder %s111, %s114
      %p120 = scmp.eq.s32.totalorder %s31, 0
      %p121 = por %p119, %p120
      %p122 = scmp.ne.s32.totalorder %s111, %s114
      %p123 = scmp.eq.s32.totalorder %s36, 1
      %p124 = por %p122, %p123
      %p125 = scmp.ne.s32.totalorder %s114, %s115
      %p126 = scmp.eq.s32.totalorder %s36, 0
      %p127 = por %p125, %p126
      %p128 = scmp.ne.s32.totalorder %s114, %s115
      %p129 = scmp.eq.s32.totalorder %s37, 1
      %p130 = por %p128, %p129
      %p132 = scmp.ne.s32.totalorder %s115, %s131
      %p133 = scmp.eq.s32.totalorder %s37, 0
      %p134 = por %p132, %p133
      %s136 = sadd.s32 %s135, 1
      %p139 = scmp.eq.s32.totalorder %s31, 1
      %p140 = scmp.ne.s32.totalorder %s135, %s137
      %p141 = scmp.eq.s32.totalorder %s31, 0
      %p142 = por %p140, %p141
      %p143 = scmp.ne.s32.totalorder %s135, %s137
      %p144 = scmp.eq.s32.totalorder %s36, 1
      %p145 = por %p143, %p144
      %p146 = scmp.ne.s32.totalorder %s137, %s138
      %p147 = scmp.eq.s32.totalorder %s36, 0
      %p148 = por %p146, %p147
      %p149 = scmp.ne.s32.totalorder %s137, %s138
      %p150 = scmp.eq.s32.totalorder %s37, 1
      %p151 = por %p149, %p150
      %p153 = scmp.ne.s32.totalorder %s138, %s152
      %p154 = scmp.eq.s32.totalorder %s37, 0
      %p155 = por %p153, %p154
      %s157 = sadd.s32 %s156, 1
      %p160 = scmp.eq.s32.totalorder %s31, 1
      %p161 = scmp.ne.s32.totalorder %s156, %s158
      %p162 = scmp.eq.s32.totalorder %s31, 0
      %p163 = por %p161, %p162
      %p164 = scmp.ne.s32.totalorder %s156, %s158
      %p165 = scmp.eq.s32.totalorder %s36, 1
      %p166 = por %p164, %p165
      %p167 = scmp.ne.s32.totalorder %s158, %s159
      %p168 = scmp.eq.s32.totalorder %s36, 0
      %p169 = por %p167, %p168
      %p170 = scmp.ne.s32.totalorder %s158, %s159
      %p171 = scmp.eq.s32.totalorder %s37, 1
      %p172 = por %p170, %p171
      %p174 = scmp.ne.s32.totalorder %s159, %s173
      %p175 = scmp.eq.s32.totalorder %s37, 0
      %p176 = por %p174, %p175
      %s178 = sadd.s32 %s177, 1
      %p181 = scmp.eq.s32.totalorder %s31, 1
      %p182 = scmp.ne.s32.totalorder %s177, %s179
      %p183 = scmp.eq.s32.totalorder %s31, 0
      %p184 = por %p182, %p183
      %p185 = scmp.ne.s32.totalorder %s177, %s179
      %p186 = scmp.eq.s32.totalorder %s36, 1
      %p187 = por %p185, %p186
      %p188 = scmp.ne.s32.totalorder %s179, %s180
      %p189 = scmp.eq.s32.totalorder %s36, 0
      %p190 = por %p188, %p189
      %p191 = scmp.ne.s32.totalorder %s179, %s180
      %p192 = scmp.eq.s32.totalorder %s37, 1
      %p193 = por %p191, %p192
      %p195 = scmp.ne.s32.totalorder %s180, %s194
      %p196 = scmp.eq.s32.totalorder %s37, 0
      %p197 = por %p195, %p196
      %s199 = sadd.s32 %s198, 1
      %p202 = scmp.eq.s32.totalorder %s31, 1
      %p203 = scmp.ne.s32.totalorder %s198, %s200
      %p204 = scmp.eq.s32.totalorder %s31, 0
      %p205 = por %p203, %p204
      %p206 = scmp.ne.s32.totalorder %s198, %s200
      %p207 = scmp.eq.s32.totalorder %s36, 1
      %p208 = por %p206, %p207
      %p209 = scmp.ne.s32.totalorder %s200, %s201
      %p210 = scmp.eq.s32.totalorder %s36, 0
      %p211 = por %p209, %p210
      %p212 = scmp.ne.s32.totalorder %s200, %s201
      %p213 = scmp.eq.s32.totalorder %s37, 1
      %p214 = por %p212, %p213
      %p216 = scmp.ne.s32.totalorder %s201, %s215
      %p217 = scmp.eq.s32.totalorder %s37, 0
      %p218 = por %p216, %p217
      %s220 = sadd.s32 %s219, 1
      %p223 = scmp.eq.s32.totalorder %s31, 1
      %p224 = scmp.ne.s32.totalorder %s219, %s221
      %p225 = scmp.eq.s32.totalorder %s31, 0
      %p226 = por %p224, %p225
      %p227 = scmp.ne.s32.totalorder %s219, %s221
      %p228 = scmp.eq.s32.totalorder %s36, 1
      %p229 = por %p227, %p228
      %p230 = scmp.ne.s32.totalorder %s221, %s222
      %p231 = scmp.eq.s32.totalorder %s36, 0
      %p232 = por %p230, %p231
      %p233 = scmp.ne.s32.totalorder %s221, %s222
      %p234 = scmp.eq.s32.totalorder %s37, 1
      %p235 = por %p233, %p234
      %p237 = scmp.ne.s32.totalorder %s222, %s236
      %p238 = scmp.eq.s32.totalorder %s37, 0
      %p239 = por %p237, %p238
      %s241 = sadd.s32 %s240, 1
      %p244 = scmp.eq.s32.totalorder %s31, 1
      %p245 = scmp.ne.s32.totalorder %s240, %s242
      %p246 = scmp.eq.s32.totalorder %s31, 0
      %p247 = por %p245, %p246
      %p248 = scmp.ne.s32.totalorder %s240, %s242
      %p249 = scmp.eq.s32.totalorder %s36, 1
      %p250 = por %p248, %p249
      %p251 = scmp.ne.s32.totalorder %s242, %s243
      %p252 = scmp.eq.s32.totalorder %s36, 0
      %p253 = por %p251, %p252
      %p254 = scmp.ne.s32.totalorder %s242, %s243
      %p255 = scmp.eq.s32.totalorder %s37, 1
      %p256 = por %p254, %p255
      %p258 = scmp.ne.s32.totalorder %s243, %s257
      %p259 = scmp.eq.s32.totalorder %s37, 0
      %p260 = por %p258, %p259
      %s261 = ssub.s32 %s38, %s50
      %s262 = ssub.s32 %s39, %s46
      %s263 = sor.u32 %s261, %s262
      %p264 = scmp.eq.s32.totalorder %s263, 0
      %s266 = sadd.s32 %s265, 1
      %s267 = scalar_select %p264, %s265, %s266
      %p270 = pneg %p264
      %p271 = scmp.eq.s32.totalorder %s31, 1
      %p272 = por %p270, %p271
      %p273 = scmp.ne.s32.totalorder %s265, %s268
      %p274 = scmp.eq.s32.totalorder %s31, 0
      %p275 = por %p273, %p274
      %p276 = scmp.ne.s32.totalorder %s265, %s268
      %p277 = scmp.eq.s32.totalorder %s36, 1
      %p278 = por %p276, %p277
      %p279 = scmp.ne.s32.totalorder %s268, %s269
      %p280 = scmp.eq.s32.totalorder %s36, 0
      %p281 = por %p279, %p280
      %p282 = scmp.ne.s32.totalorder %s268, %s269
      %p283 = scmp.eq.s32.totalorder %s37, 1
      %p284 = por %p282, %p283
      %p286 = scmp.ne.s32.totalorder %s269, %s285
      %p287 = scmp.eq.s32.totalorder %s37, 0
      %p288 = por %p286, %p287
      %s289 = ssub.s32 %s38, %s50
      %s290 = ssub.s32 %s39, %s46
      %s291 = sor.u32 %s289, %s290
      %p292 = scmp.eq.s32.totalorder %s291, 0
      %s294 = sadd.s32 %s293, 1
      %s295 = scalar_select %p292, %s293, %s294
      %p298 = pneg %p292
      %p299 = scmp.eq.s32.totalorder %s31, 1
      %p300 = por %p298, %p299
      %p301 = scmp.ne.s32.totalorder %s293, %s296
      %p302 = scmp.eq.s32.totalorder %s31, 0
      %p303 = por %p301, %p302
      %p304 = scmp.ne.s32.totalorder %s293, %s296
      %p305 = scmp.eq.s32.totalorder %s36, 1
      %p306 = por %p304, %p305
      %p307 = scmp.ne.s32.totalorder %s296, %s297
      %p308 = scmp.eq.s32.totalorder %s36, 0
      %p309 = por %p307, %p308
      %p310 = scmp.ne.s32.totalorder %s296, %s297
      %p311 = scmp.eq.s32.totalorder %s37, 1
      %p312 = por %p310, %p311
      %p314 = scmp.ne.s32.totalorder %s297, %s313
      %p315 = scmp.eq.s32.totalorder %s37, 0
      %p316 = por %p314, %p315
      %s317 = ssub.s32 %s38, %s50
      %s318 = ssub.s32 %s39, %s46
      %s319 = sor.u32 %s317, %s318
      %p320 = scmp.eq.s32.totalorder %s319, 0
      %s322 = sadd.s32 %s321, 1
      %s323 = scalar_select %p320, %s321, %s322
      %p326 = pneg %p320
      %p327 = scmp.eq.s32.totalorder %s31, 1
      %p328 = por %p326, %p327
      %p329 = scmp.ne.s32.totalorder %s321, %s324
      %p330 = scmp.eq.s32.totalorder %s31, 0
      %p331 = por %p329, %p330
      %p332 = scmp.ne.s32.totalorder %s321, %s324
      %p333 = scmp.eq.s32.totalorder %s36, 1
      %p334 = por %p332, %p333
      %p335 = scmp.ne.s32.totalorder %s324, %s325
      %p336 = scmp.eq.s32.totalorder %s36, 0
      %p337 = por %p335, %p336
      %p338 = scmp.ne.s32.totalorder %s324, %s325
      %p339 = scmp.eq.s32.totalorder %s37, 1
      %p340 = por %p338, %p339
      %p342 = scmp.ne.s32.totalorder %s325, %s341
      %p343 = scmp.eq.s32.totalorder %s37, 0
      %p344 = por %p342, %p343
      %p345 = scmp.le.s32.totalorder 1, %s31
      %p346 = scmp.lt.s32.totalorder %s31, 3
      %p347 = pnand %p345, %p346
      %p348 = pneg %p347
      // Predicated region
      $region9: #{tpu_custom_call.1} parent=5 // pred_check
        _
      $region10: #{tpu_custom_call.1} parent=5 // pred_check_branch
        %350 = sbr.rel (%p347) target = $region12
      $region11: #{tpu_custom_call.1} parent=5 // pred_region
        %s351 = ssub.s32 %s31, 1
        // Predicated region
        $region13: #{tpu_custom_call.1} parent=11 // pred_check
          %p352 = pneg %p148
        $region14: #{tpu_custom_call.1} parent=11 // pred_check_branch
          %354 = sbr.rel (%p352) target = $region16
        $region15: #{tpu_custom_call.1} parent=11 // pred_region
          %s356 = ssub.s32 256, 256
          %357 = vsyncadd [#allocation9], %s356
          %s358 = sshll.u32 [#allocation8], 4
          %s359 = int_to_ptr.vmem [resolvable:$true] %s358
          %364 = dma.hbm_to_vmem [thread:$0]  %s3, 256, %s359, [#allocation9], 64, 64, 4
        $region16: #{tpu_custom_call.1} parent=11 // pred_fallthru
          _
        // Predicated region
        $region17: #{tpu_custom_call.1} parent=11 // pred_check
          %p365 = pneg %p169
        $region18: #{tpu_custom_call.1} parent=11 // pred_check_branch
          %367 = sbr.rel (%p365) target = $region20
        $region19: #{tpu_custom_call.1} parent=11 // pred_region
          _
        $region20: #{tpu_custom_call.1} parent=11 // pred_fallthru
          _
        // Predicated region
        $region21: #{tpu_custom_call.1} parent=11 // pred_check
          %p368 = pneg %p190
        $region22: #{tpu_custom_call.1} parent=11 // pred_check_branch
          %370 = sbr.rel (%p368) target = $region24
        $region23: #{tpu_custom_call.1} parent=11 // pred_region
          _
        $region24: #{tpu_custom_call.1} parent=11 // pred_fallthru
          _
        // Predicated region
        $region25: #{tpu_custom_call.1} parent=11 // pred_check
          %p371 = pneg %p211
        $region26: #{tpu_custom_call.1} parent=11 // pred_check_branch
          %373 = sbr.rel (%p371) target = $region28
        $region27: #{tpu_custom_call.1} parent=11 // pred_region
          _
        $region28: #{tpu_custom_call.1} parent=11 // pred_fallthru
          _
        // Predicated region
        $region29: #{tpu_custom_call.1} parent=11 // pred_check
          %p374 = pneg %p232
        $region30: #{tpu_custom_call.1} parent=11 // pred_check_branch
          %376 = sbr.rel (%p374) target = $region32
        $region31: #{tpu_custom_call.1} parent=11 // pred_region
          %s378 = ssub.s32 256, 256
          %379 = vsyncadd [#allocation9], %s378
          %s380 = sshll.u32 [#allocation10], 4
          %s381 = int_to_ptr.vmem [resolvable:$true] %s380
          %386 = dma.hbm_to_vmem [thread:$0]  %s7, 256, %s381, [#allocation9], 64, 64, 4
        $region32: #{tpu_custom_call.1} parent=11 // pred_fallthru
          _
        // Predicated region
        $region33: #{tpu_custom_call.1} parent=11 // pred_check
          %p387 = pneg %p253
        $region34: #{tpu_custom_call.1} parent=11 // pred_check_branch
          %389 = sbr.rel (%p387) target = $region36
        $region35: #{tpu_custom_call.1} parent=11 // pred_region
          _
        $region36: #{tpu_custom_call.1} parent=11 // pred_fallthru
          _
      $region12: #{tpu_custom_call.1} parent=5 // pred_fallthru
        _
      %p390 = scmp.lt.s32.totalorder %s31, 2
      // Predicated region
      $region37: #{tpu_custom_call.1} parent=5 // pred_check
        %p391 = pneg %p390
      $region38: #{tpu_custom_call.1} parent=5 // pred_check_branch
        %393 = sbr.rel (%p391) target = $region40
      $region39: #{tpu_custom_call.1} parent=5 // pred_region
        // Predicated region
        $region41: #{tpu_custom_call.1} parent=39 // pred_check
          %p394 = pneg %p65
        $region42: #{tpu_custom_call.1} parent=39 // pred_check_branch
          %396 = sbr.rel (%p394) target = $region44
        $region43: #{tpu_custom_call.1} parent=39 // pred_region
          %s397 = sand.u32 %s55, 1
          %s398 = scalar_lea.sflag [#allocation3], %s397
          %s399 = sand.u32 %s55, 1
          %s400 = smul.addr %s399, 4
          %s401 = scalar_lea.vmem [#allocation2], %s400
          %s403 = ssub.s32 64, 64
          %404 = vsyncadd %s398, %s403
          %s405 = sadd.s32 %s39, %s38
          %s406 = smul.addr %s405, 64
          %s407 = scalar_lea.hbm %s0, %s406
          %s409 = sshll.u32 %s401, 4
          %s410 = int_to_ptr.vmem [resolvable:$true] %s409
          %412 = dma.hbm_to_vmem [thread:$0]  %s407, 64, %s410, %s398
        $region44: #{tpu_custom_call.1} parent=39 // pred_fallthru
          _
        // Predicated region
        $region45: #{tpu_custom_call.1} parent=39 // pred_check
          %p413 = pneg %p93
        $region46: #{tpu_custom_call.1} parent=39 // pred_check_branch
          %415 = sbr.rel (%p413) target = $region48
        $region47: #{tpu_custom_call.1} parent=39 // pred_region
          %s416 = sand.u32 %s31, 1
          %s417 = scalar_lea.sflag [#allocation6], %s416
          %s418 = sand.u32 %s83, 1
          %s419 = smul.addr %s418, 4
          %s420 = scalar_lea.vmem [#allocation5], %s419
          %s422 = ssub.s32 64, 64
          %423 = vsyncadd %s417, %s422
          %s424 = sadd.s32 %s39, %s38
          %s425 = smul.addr %s424, 64
          %s426 = scalar_lea.hbm %s1, %s425
          %s428 = sshll.u32 %s420, 4
          %s429 = int_to_ptr.vmem [resolvable:$true] %s428
          %431 = dma.hbm_to_vmem [thread:$0]  %s426, 64, %s429, %s417
        $region48: #{tpu_custom_call.1} parent=39 // pred_fallthru
          _
        // Predicated region
        $region49: #{tpu_custom_call.1} parent=39 // pred_check
          %p432 = pneg %p121
        $region50: #{tpu_custom_call.1} parent=39 // pred_check_branch
          %434 = sbr.rel (%p432) target = $region52
        $region51: #{tpu_custom_call.1} parent=39 // pred_region
          %s435 = sand.u32 %s31, 1
          %s436 = scalar_lea.sflag [#allocation6], %s435
          %s437 = sand.u32 %s111, 1
          %s438 = smul.addr %s437, 4
          %s439 = scalar_lea.vmem [#allocation7], %s438
          %s441 = ssub.s32 64, 64
          %442 = vsyncadd %s436, %s441
          %s443 = sadd.s32 %s39, %s38
          %s444 = smul.addr %s443, 64
          %s445 = scalar_lea.hbm %s2, %s444
          %s447 = sshll.u32 %s439, 4
          %s448 = int_to_ptr.vmem [resolvable:$true] %s447
          %450 = dma.hbm_to_vmem [thread:$0]  %s445, 64, %s448, %s436
        $region52: #{tpu_custom_call.1} parent=39 // pred_fallthru
          _
      $region40: #{tpu_custom_call.1} parent=5 // pred_fallthru
        _
      %p451 = scmp.le.s32.totalorder 1, %s31
      %p452 = scmp.lt.s32.totalorder %s31, 3
      %p453 = pnand %p451, %p452
      %p454 = pneg %p453
      // Predicated region
      $region53: #{tpu_custom_call.1} parent=5 // pred_check
        _
      $region54: #{tpu_custom_call.1} parent=5 // pred_check_branch
        %456 = sbr.rel (%p453) target = $region56
      $region55: #{tpu_custom_call.1} parent=5 // pred_region
        %s457 = ssub.s32 %s31, 1
        %s458 = sand.u32 %s58, 1
        %s459 = scalar_lea.sflag [#allocation3], %s458
        %s460 = sand.u32 %s58, 1
        %s461 = smul.addr %s460, 4
        %s462 = scalar_lea.vmem [#allocation2], %s461
        // Predicated region
        $region57: #{tpu_custom_call.1} parent=55 // pred_check
          %p463 = pneg %p71
        $region58: #{tpu_custom_call.1} parent=55 // pred_check_branch
          %465 = sbr.rel (%p463) target = $region60
        $region59: #{tpu_custom_call.1} parent=55 // pred_region
          %466 = dma.done %s459, 64
        $region60: #{tpu_custom_call.1} parent=55 // pred_fallthru
          _
        %s467 = sand.u32 %s36, 1
        %s468 = scalar_lea.sflag [#allocation6], %s467
        %s469 = sand.u32 %s86, 1
        %s470 = smul.addr %s469, 4
        %s471 = scalar_lea.vmem [#allocation5], %s470
        // Predicated region
        $region61: #{tpu_custom_call.1} parent=55 // pred_check
          %p472 = pneg %p99
        $region62: #{tpu_custom_call.1} parent=55 // pred_check_branch
          %474 = sbr.rel (%p472) target = $region64
        $region63: #{tpu_custom_call.1} parent=55 // pred_region
          %475 = dma.done %s468, 64
        $region64: #{tpu_custom_call.1} parent=55 // pred_fallthru
          _
        %s476 = sand.u32 %s36, 1
        %s477 = scalar_lea.sflag [#allocation6], %s476
        %s478 = sand.u32 %s114, 1
        %s479 = smul.addr %s478, 4
        %s480 = scalar_lea.vmem [#allocation7], %s479
        // Predicated region
        $region65: #{tpu_custom_call.1} parent=55 // pred_check
          %p481 = pneg %p127
        $region66: #{tpu_custom_call.1} parent=55 // pred_check_branch
          %483 = sbr.rel (%p481) target = $region68
        $region67: #{tpu_custom_call.1} parent=55 // pred_region
          %484 = dma.done %s477, 64
        $region68: #{tpu_custom_call.1} parent=55 // pred_fallthru
          _
        // Predicated region
        $region69: #{tpu_custom_call.1} parent=55 // pred_check
          %p485 = pneg %p148
        $region70: #{tpu_custom_call.1} parent=55 // pred_check_branch
          %487 = sbr.rel (%p485) target = $region72
        $region71: #{tpu_custom_call.1} parent=55 // pred_region
          %488 = dma.done [#allocation9], 256
        $region72: #{tpu_custom_call.1} parent=55 // pred_fallthru
          _
        // Predicated region
        $region73: #{tpu_custom_call.1} parent=55 // pred_check
          %p489 = pneg %p232
        $region74: #{tpu_custom_call.1} parent=55 // pred_check_branch
          %491 = sbr.rel (%p489) target = $region76
        $region75: #{tpu_custom_call.1} parent=55 // pred_region
          %492 = dma.done [#allocation9], 256
        $region76: #{tpu_custom_call.1} parent=55 // pred_fallthru
          _
        %s493 = sand.u32 %s58, 1
        %s494 = scalar_lea.sflag [#allocation3], %s493
        %s495 = sand.u32 %s58, 1
        %s496 = smul.addr %s495, 4
        %s497 = scalar_lea.vmem [#allocation2], %s496
        %p498 = pneg %p71
        %p499 = pneg %p68
        %s500 = sand.u32 %s36, 1
        %s501 = scalar_lea.sflag [#allocation6], %s500
        %s502 = sand.u32 %s86, 1
        %s503 = smul.addr %s502, 4
        %s504 = scalar_lea.vmem [#allocation5], %s503
        %p505 = pneg %p99
        %p506 = pneg %p96
        %s507 = sand.u32 %s36, 1
        %s508 = scalar_lea.sflag [#allocation6], %s507
        %s509 = sand.u32 %s114, 1
        %s510 = smul.addr %s509, 4
        %s511 = scalar_lea.vmem [#allocation7], %s510
        %p512 = pneg %p127
        %p513 = pneg %p124
        %p514 = pneg %p148
        %p515 = pneg %p145
        %p516 = pneg %p169
        %p517 = pneg %p166
        %p518 = pneg %p190
        %p519 = pneg %p187
        %p520 = pneg %p211
        %p521 = pneg %p208
        %p522 = pneg %p232
        %p523 = pneg %p229
        %p524 = pneg %p253
        %p525 = pneg %p250
        %p526 = pneg %p281
        %p527 = pneg %p278
        %s528 = sand.u32 %s268, 1
        %s529 = scalar_lea.sflag [#allocation4], %s528
        %s530 = sand.u32 %s268, 1
        %s531 = smul.addr %s530, 4
        %s532 = scalar_lea.vmem [#allocation11], %s531
        %p533 = pneg %p309
        %p534 = pneg %p306
        %s535 = sand.u32 %s36, 1
        %s536 = scalar_lea.sflag [#allocation13], %s535
        %s537 = sand.u32 %s296, 1
        %s538 = smul.addr %s537, 4
        %s539 = scalar_lea.vmem [#allocation12], %s538
        %p540 = pneg %p337
        %p541 = pneg %p334
        %s542 = sand.u32 %s36, 1
        %s543 = scalar_lea.sflag [#allocation13], %s542
        %s544 = sand.u32 %s324, 1
        %s545 = smul.addr %s544, 4
        %s546 = scalar_lea.vmem [#allocation14], %s545
        %v548 = vld [vmem:[%s462] sm:$0xf]
        %v549 = vld [vmem:[#allocation8] sm:$0xf]
        %v550 = vld [vmem:[#allocation8 + $0x4] sm:$0xf]
        %v551 = vld [vmem:[#allocation8 + $0x8] sm:$0xf]
        %v552 = vld [vmem:[#allocation8 + $0xc] sm:$0xf]
        %v553 = vld [vmem:[%s4] sm:$0x1]
        %v555 = vlaneseq
        %v556 = vshrl.u32 %v555, 7
        %v557 = vsub.s32 0, %v556
        %v558 = vrot.slane %v553, %v557
        %v564 = vunpack.c.l.b16 %v549
        %v565 = vunpack.c.l.b16 %v550
        %v566 = vunpack.c.l.b16 %v551
        %v567 = vunpack.c.l.b16 %v552
        %v568 = vpack.c.b16 %v565, %v564
        %v569 = vpack.c.b16 %v567, %v566
        %vm572 = vcmask 261120
        %v574 = vsel %vm572, %v548, 0
        %576 = vmatprep.subr.bf16.mxu0 0
        %577 = vmatpush1.bf16.msra.mxu0 %v568
        %578 = vmatprep.subr.bf16.mxu0 0
        %579 = vmatpush1.bf16.msra.mxu0 %v569
        %580 = vmatprep.subr.bf16.mxu0 0
        %581 = vmatpush1.bf16.msra.mxu0 0
        %582 = vmatprep.subr.bf16.mxu0 0
        %583 = vmatpush1.bf16.msra.mxu0 0
        %584 = vmatprep.subr.bf16.mxu0 0
        %585 = vmatpush1.bf16.msra.mxu0 0
        %586 = vmatprep.subr.bf16.mxu0 0
        %587 = vmatpush1.bf16.msra.mxu0 0
        %588 = vmatprep.subr.bf16.mxu0 0
        %589 = vmatpush1.bf16.msra.mxu0 0
        %590 = vmatprep.subr.bf16.mxu0 0
        %591 = vmatpush1.bf16.msra.mxu0 0
        %592 = vmatprep.subr.bf16.mxu0 0
        %593 = vmatpush1.bf16.msra.mxu0 0
        %594 = vmatprep.subr.bf16.mxu0 0
        %595 = vmatpush1.bf16.msra.mxu0 0
        %596 = vmatprep.subr.bf16.mxu0 0
        %597 = vmatpush1.bf16.msra.mxu0 0
        %598 = vmatprep.subr.bf16.mxu0 0
        %599 = vmatpush1.bf16.msra.mxu0 0
        %600 = vmatprep.subr.bf16.mxu0 0
        %601 = vmatpush1.bf16.msra.mxu0 0
        %602 = vmatprep.subr.bf16.mxu0 0
        %603 = vmatpush1.bf16.msra.mxu0 0
        %604 = vmatprep.subr.bf16.mxu0 0
        %605 = vmatpush1.bf16.msra.mxu0 0
        %606 = vmatprep.subr.bf16.mxu0 0
        %607 = vmatpush1.bf16.msra.mxu0 0
        %608 = vmatprep.mubr.bf16.mxu0 0
        %609 = vmatmul.mubr.bf16.gmra.mrb[0].mxu0 %v574
        %v610 = vpop.f32.mrb[0].mxu0
        %v611 = vadd.f32 %v558, %v610
        %v612 = vpop.f32.mrb[0].mxu0
        %v613 = vpop.f32.mrb[0].mxu0
        %v614 = vpop.f32.mrb[0].mxu0
        %615 = vdwg.mxu0
        %v616 = vpack.c.bf16 %v611, %v611
        %vm617 = vcmask 257024
        %618 = vst.msk [vmem:[%s532] sm:$0xf] %vm617, %v616
        %v619 = vld [vmem:[%s471] sm:$0xf]
        %v620 = vld [vmem:[%s5] sm:$0xf]
        %v621 = vld [vmem:[%s5 + $0x4] sm:$0xf]
        %v622 = vld [vmem:[%s5 + $0x8] sm:$0xf]
        %v623 = vld [vmem:[%s5 + $0xc] sm:$0xf]
        %v624 = vld [vmem:[%s6] sm:$0x1]
        %v626 = vlaneseq
        %v627 = vshrl.u32 %v626, 7
        %v628 = vsub.s32 0, %v627
        %v629 = vrot.slane %v624, %v628
        %v635 = vunpack.c.l.b16 %v620
        %v636 = vunpack.c.l.b16 %v621
        %v637 = vunpack.c.l.b16 %v622
        %v638 = vunpack.c.l.b16 %v623
        %v639 = vpack.c.b16 %v636, %v635
        %v640 = vpack.c.b16 %v638, %v637
        %v644 = vsel %vm572, %v619, 0
        %646 = vmatprep.subr.bf16.mxu0 0
        %647 = vmatpush1.bf16.msra.mxu0 %v639
        %648 = vmatprep.subr.bf16.mxu0 0
        %649 = vmatpush1.bf16.msra.mxu0 %v640
        %650 = vmatprep.subr.bf16.mxu0 0
        %651 = vmatpush1.bf16.msra.mxu0 0
        %652 = vmatprep.subr.bf16.mxu0 0
        %653 = vmatpush1.bf16.msra.mxu0 0
        %654 = vmatprep.subr.bf16.mxu0 0
        %655 = vmatpush1.bf16.msra.mxu0 0
        %656 = vmatprep.subr.bf16.mxu0 0
        %657 = vmatpush1.bf16.msra.mxu0 0
        %658 = vmatprep.subr.bf16.mxu0 0
        %659 = vmatpush1.bf16.msra.mxu0 0
        %660 = vmatprep.subr.bf16.mxu0 0
        %661 = vmatpush1.bf16.msra.mxu0 0
        %662 = vmatprep.subr.bf16.mxu0 0
        %663 = vmatpush1.bf16.msra.mxu0 0
        %664 = vmatprep.subr.bf16.mxu0 0
        %665 = vmatpush1.bf16.msra.mxu0 0
        %666 = vmatprep.subr.bf16.mxu0 0
        %667 = vmatpush1.bf16.msra.mxu0 0
        %668 = vmatprep.subr.bf16.mxu0 0
        %669 = vmatpush1.bf16.msra.mxu0 0
        %670 = vmatprep.subr.bf16.mxu0 0
        %671 = vmatpush1.bf16.msra.mxu0 0
        %672 = vmatprep.subr.bf16.mxu0 0
        %673 = vmatpush1.bf16.msra.mxu0 0
        %674 = vmatprep.subr.bf16.mxu0 0
        %675 = vmatpush1.bf16.msra.mxu0 0
        %676 = vmatprep.subr.bf16.mxu0 0
        %677 = vmatpush1.bf16.msra.mxu0 0
        %678 = vmatprep.mubr.bf16.mxu0 0
        %679 = vmatmul.mubr.bf16.gmra.mrb[0].mxu0 %v644
        %v680 = vpop.f32.mrb[0].mxu0
        %v681 = vadd.f32 %v629, %v680
        %v682 = vpop.f32.mrb[0].mxu0
        %v683 = vpop.f32.mrb[0].mxu0
        %v684 = vpop.f32.mrb[0].mxu0
        %685 = vdwg.mxu0
        %v686 = vpack.c.bf16 %v681, %v681
        %687 = vst.msk [vmem:[%s539] sm:$0xf] %vm617, %v686
        %v688 = vld [vmem:[%s480] sm:$0xf]
        %v689 = vld [vmem:[#allocation10] sm:$0xf]
        %v690 = vld [vmem:[#allocation10 + $0x4] sm:$0xf]
        %v691 = vld [vmem:[#allocation10 + $0x8] sm:$0xf]
        %v692 = vld [vmem:[#allocation10 + $0xc] sm:$0xf]
        %v693 = vld [vmem:[%s8] sm:$0x1]
        %v695 = vlaneseq
        %v696 = vshrl.u32 %v695, 7
        %v697 = vsub.s32 0, %v696
        %v698 = vrot.slane %v693, %v697
        %v704 = vunpack.c.l.b16 %v689
        %v705 = vunpack.c.l.b16 %v690
        %v706 = vunpack.c.l.b16 %v691
        %v707 = vunpack.c.l.b16 %v692
        %v708 = vpack.c.b16 %v705, %v704
        %v709 = vpack.c.b16 %v707, %v706
        %v713 = vsel %vm572, %v688, 0
        %715 = vmatprep.subr.bf16.mxu0 0
        %716 = vmatpush1.bf16.msra.mxu0 %v708
        %717 = vmatprep.subr.bf16.mxu0 0
        %718 = vmatpush1.bf16.msra.mxu0 %v709
        %719 = vmatprep.subr.bf16.mxu0 0
        %720 = vmatpush1.bf16.msra.mxu0 0
        %721 = vmatprep.subr.bf16.mxu0 0
        %722 = vmatpush1.bf16.msra.mxu0 0
        %723 = vmatprep.subr.bf16.mxu0 0
        %724 = vmatpush1.bf16.msra.mxu0 0
        %725 = vmatprep.subr.bf16.mxu0 0
        %726 = vmatpush1.bf16.msra.mxu0 0
        %727 = vmatprep.subr.bf16.mxu0 0
        %728 = vmatpush1.bf16.msra.mxu0 0
        %729 = vmatprep.subr.bf16.mxu0 0
        %730 = vmatpush1.bf16.msra.mxu0 0
        %731 = vmatprep.subr.bf16.mxu0 0
        %732 = vmatpush1.bf16.msra.mxu0 0
        %733 = vmatprep.subr.bf16.mxu0 0
        %734 = vmatpush1.bf16.msra.mxu0 0
        %735 = vmatprep.subr.bf16.mxu0 0
        %736 = vmatpush1.bf16.msra.mxu0 0
        %737 = vmatprep.subr.bf16.mxu0 0
        %738 = vmatpush1.bf16.msra.mxu0 0
        %739 = vmatprep.subr.bf16.mxu0 0
        %740 = vmatpush1.bf16.msra.mxu0 0
        %741 = vmatprep.subr.bf16.mxu0 0
        %742 = vmatpush1.bf16.msra.mxu0 0
        %743 = vmatprep.subr.bf16.mxu0 0
        %744 = vmatpush1.bf16.msra.mxu0 0
        %745 = vmatprep.subr.bf16.mxu0 0
        %746 = vmatpush1.bf16.msra.mxu0 0
        %747 = vmatprep.mubr.bf16.mxu0 0
        %748 = vmatmul.mubr.bf16.gmra.mrb[0].mxu0 %v713
        %v749 = vpop.f32.mrb[0].mxu0
        %v750 = vadd.f32 %v698, %v749
        %v751 = vpop.f32.mrb[0].mxu0
        %v752 = vpop.f32.mrb[0].mxu0
        %v753 = vpop.f32.mrb[0].mxu0
        %754 = vdwg.mxu0
        %v755 = vpack.c.bf16 %v750, %v750
        %756 = vst.msk [vmem:[%s546] sm:$0xf] %vm617, %v755
        %s757 = sand.u32 %s268, 1
        %s758 = scalar_lea.sflag [#allocation4], %s757
        %s759 = sand.u32 %s268, 1
        %s760 = smul.addr %s759, 4
        %s761 = scalar_lea.vmem [#allocation11], %s760
        %s762 = sand.u32 %s36, 1
        %s763 = scalar_lea.sflag [#allocation13], %s762
        %s764 = sand.u32 %s296, 1
        %s765 = smul.addr %s764, 4
        %s766 = scalar_lea.vmem [#allocation12], %s765
        %s767 = sand.u32 %s36, 1
        %s768 = scalar_lea.sflag [#allocation13], %s767
        %s769 = sand.u32 %s324, 1
        %s770 = smul.addr %s769, 4
        %s771 = scalar_lea.vmem [#allocation14], %s770
        // Predicated region
        $region77: #{tpu_custom_call.1} parent=55 // pred_check
          %p772 = pneg %p278
        $region78: #{tpu_custom_call.1} parent=55 // pred_check_branch
          %774 = sbr.rel (%p772) target = $region80
        $region79: #{tpu_custom_call.1} parent=55 // pred_region
          %s776 = ssub.s32 64, 64
          %777 = vsyncadd %s758, %s776
          %s778 = sadd.s32 %s41, %s40
          %s779 = smul.addr %s778, 64
          %s780 = scalar_lea.hbm %s9, %s779
          %s782 = sshll.u32 %s761, 4
          %s783 = int_to_ptr.vmem [resolvable:$true] %s782
          %785 = dma.vmem_to_hbm [thread:$0]  %s783, 64, %s780, %s758
        $region80: #{tpu_custom_call.1} parent=55 // pred_fallthru
          _
        // Predicated region
        $region81: #{tpu_custom_call.1} parent=55 // pred_check
          %p786 = pneg %p306
        $region82: #{tpu_custom_call.1} parent=55 // pred_check_branch
          %788 = sbr.rel (%p786) target = $region84
        $region83: #{tpu_custom_call.1} parent=55 // pred_region
          %s790 = ssub.s32 64, 64
          %791 = vsyncadd %s763, %s790
          %s792 = sadd.s32 %s41, %s40
          %s793 = smul.addr %s792, 64
          %s794 = scalar_lea.hbm %s10, %s793
          %s796 = sshll.u32 %s766, 4
          %s797 = int_to_ptr.vmem [resolvable:$true] %s796
          %799 = dma.vmem_to_hbm [thread:$0]  %s797, 64, %s794, %s763
        $region84: #{tpu_custom_call.1} parent=55 // pred_fallthru
          _
        // Predicated region
        $region85: #{tpu_custom_call.1} parent=55 // pred_check
          %p800 = pneg %p334
        $region86: #{tpu_custom_call.1} parent=55 // pred_check_branch
          %802 = sbr.rel (%p800) target = $region88
        $region87: #{tpu_custom_call.1} parent=55 // pred_region
          %s804 = ssub.s32 64, 64
          %805 = vsyncadd %s768, %s804
          %s806 = sadd.s32 %s41, %s40
          %s807 = smul.addr %s806, 64
          %s808 = scalar_lea.hbm %s11, %s807
          %s810 = sshll.u32 %s771, 4
          %s811 = int_to_ptr.vmem [resolvable:$true] %s810
          %813 = dma.vmem_to_hbm [thread:$0]  %s811, 64, %s808, %s768
        $region88: #{tpu_custom_call.1} parent=55 // pred_fallthru
          _
      $region56: #{tpu_custom_call.1} parent=5 // pred_fallthru
        _
      %p814 = scmp.le.s32.totalorder 2, %s31
      // Predicated region
      $region89: #{tpu_custom_call.1} parent=5 // pred_check
        %p815 = pneg %p814
      $region90: #{tpu_custom_call.1} parent=5 // pred_check_branch
        %817 = sbr.rel (%p815) target = $region92
      $region91: #{tpu_custom_call.1} parent=5 // pred_region
        %s818 = ssub.s32 %s31, 2
        // Predicated region
        $region93: #{tpu_custom_call.1} parent=91 // pred_check
          %p819 = pneg %p284
        $region94: #{tpu_custom_call.1} parent=91 // pred_check_branch
          %821 = sbr.rel (%p819) target = $region96
        $region95: #{tpu_custom_call.1} parent=91 // pred_region
          %s822 = sand.u32 %s269, 1
          %s823 = scalar_lea.sflag [#allocation4], %s822
          %s824 = sand.u32 %s269, 1
          %s825 = smul.addr %s824, 4
          %s826 = scalar_lea.vmem [#allocation11], %s825
          %827 = dma.done %s823, 64
        $region96: #{tpu_custom_call.1} parent=91 // pred_fallthru
          _
        // Predicated region
        $region97: #{tpu_custom_call.1} parent=91 // pred_check
          %p828 = pneg %p312
        $region98: #{tpu_custom_call.1} parent=91 // pred_check_branch
          %830 = sbr.rel (%p828) target = $region100
        $region99: #{tpu_custom_call.1} parent=91 // pred_region
          %s831 = sand.u32 %s37, 1
          %s832 = scalar_lea.sflag [#allocation13], %s831
          %s833 = sand.u32 %s297, 1
          %s834 = smul.addr %s833, 4
          %s835 = scalar_lea.vmem [#allocation12], %s834
          %836 = dma.done %s832, 64
        $region100: #{tpu_custom_call.1} parent=91 // pred_fallthru
          _
        // Predicated region
        $region101: #{tpu_custom_call.1} parent=91 // pred_check
          %p837 = pneg %p340
        $region102: #{tpu_custom_call.1} parent=91 // pred_check_branch
          %839 = sbr.rel (%p837) target = $region104
        $region103: #{tpu_custom_call.1} parent=91 // pred_region
          %s840 = sand.u32 %s37, 1
          %s841 = scalar_lea.sflag [#allocation13], %s840
          %s842 = sand.u32 %s325, 1
          %s843 = smul.addr %s842, 4
          %s844 = scalar_lea.vmem [#allocation14], %s843
          %845 = dma.done %s841, 64
        $region104: #{tpu_custom_call.1} parent=91 // pred_fallthru
          _
      $region92: #{tpu_custom_call.1} parent=5 // pred_fallthru
        _
    $region6: #{tpu_custom_call.1} parent=1 // loop_footer
      %s35 = sadd.s32 1, %s31
    $region7: #{tpu_custom_call.1} parent=1 // loop_footer_branch
      %30 = sbr.rel target = $region3
    $region8: #{tpu_custom_call.1} parent=1 // loop_exit
      _
    %846 = vsyncpa [#allocation3], 1
    %s847 = scalar_lea.sflag [#allocation3], 1
    %848 = vsyncpa %s847, 1
    %849 = vsyncpa [#allocation6], 1
    %s850 = scalar_lea.sflag [#allocation6], 1
    %851 = vsyncpa %s850, 1
    %852 = vsyncpa [#allocation9], 1
    %853 = vsyncpa [#allocation4], 1
    %s854 = scalar_lea.sflag [#allocation4], 1
    %855 = vsyncpa %s854, 1
    %856 = vsyncpa [#allocation13], 1
    %s857 = scalar_lea.sflag [#allocation13], 1
    %858 = vsyncpa %s857, 1

</llo_original>
